<compile_context>
chip_gen: v5e
topology: v5e:2x2
jax: 0.10.0
libtpu: 0.0.40
codegen_flags: <defaults>
</compile_context>

<pallas_src>
import math

import jax
import jax.numpy as jnp
from jax.experimental import pallas as pl
from jax.experimental.pallas import tpu as pltpu


def _time_encoding_kernel(x_ref, pe_ref, o_ref):
    # x_ref : (TS, DL)  sequence tile of one batch element (lane-dense last dim)
    # pe_ref: (1,  DL)  time-encoding row for this batch element
    # o_ref : (TS, DL)
    # Broadcast add over the sequence (sublane) axis on the VPU.
    # TODO(synk): training-mode dropout (stochastic mask) not implemented;
    # eval-mode dropout is the identity.
    o_ref[...] = x_ref[...] + pe_ref[...]


def _choose_seq_tile(s_len: int, row_bytes: int, target_bytes: int) -> int:
    """Largest multiple-of-8 divisor of s_len whose block fits target_bytes.

    Falls back to the smallest multiple-of-8 divisor, then to the full extent
    (always legal: block dim == array dim).
    """
    if s_len * row_bytes <= target_bytes:
        return s_len
    best = None
    for ts in range(8, s_len, 8):
        if s_len % ts == 0 and ts * row_bytes <= target_bytes:
            best = ts
    if best is not None:
        return best
    for ts in range(8, s_len, 8):
        if s_len % ts == 0:
            return ts
    return s_len


def time_encoding(x, t, pe, *, target_block_bytes=4 << 20):
    """out = x + pe[t]   (eval-mode dropout == identity).

    x : [B, S, D]  float (bf16 halves HBM traffic if the model allows it)
    t : [B]        integer time index per batch element
    pe: [max_len, 1, D]  sinusoidal buffer (see make_pe)
    """
    B, S, D = x.shape
    max_len = pe.shape[0]

    # PyTorch indexing would raise on OOB; clamp instead of letting a DMA
    # read out of range.
    t = jnp.clip(t.astype(jnp.int32), 0, max_len - 1)

    # Wrapper-side gather: [B, D] — tiny, cheaper than per-step sub-vreg DMAs.
    pe_sel = pe[t, 0, :].astype(x.dtype)

    # Lane-dense fold: if D is lane-sparse (< 128), fold F consecutive
    # sequence positions into the lane axis so output stores are unmasked.
    fold = 1
    if D < 128 and 128 % D == 0 and S % (128 // D) == 0:
        fold = 128 // D
    s_len, d_lane = S // fold, D * fold

    x2 = x.reshape(B, s_len, d_lane)
    pe2 = jnp.tile(pe_sel, (1, fold)).reshape(B, 1, d_lane)

    row_bytes = d_lane * x.dtype.itemsize
    ts = _choose_seq_tile(s_len, row_bytes, target_block_bytes)
    grid = (B, s_len // ts)

    out2 = pl.pallas_call(
        _time_encoding_kernel,
        out_shape=jax.ShapeDtypeStruct((B, s_len, d_lane), x.dtype),
        grid=grid,
        in_specs=[
            # x tile for (batch b, seq-tile s); batch dim squeezed out.
            pl.BlockSpec((None, ts, d_lane), lambda b, s: (b, s, 0)),
            # pe row for batch b; constant over the inner seq-tile axis, so it
            # stays resident across all sequence tiles of one batch element.
            pl.BlockSpec((None, 1, d_lane), lambda b, s: (b, 0, 0)),
        ],
        out_specs=pl.BlockSpec((None, ts, d_lane), lambda b, s: (b, s, 0)),
        # Pure overwrite: donate x's buffer to the output (cuts HBM footprint).
        input_output_aliases={0: 0},
        compiler_params=pltpu.CompilerParams(
            # Every grid point is independent -> both axes parallel
            # (lets v7x shard grid points across its 2 TensorCores).
            dimension_semantics=("parallel", "parallel"),
            # Above the 16/32 MiB scoped defaults, below every chip's physical
            # VMEM; ample for double-buffered ~4 MiB x/out blocks.
            vmem_limit_bytes=48 * 1024 * 1024,
        ),
    )(x2, pe2)

    return out2.reshape(B, S, D)


def make_pe(d_model: int, max_len: int = 5000) -> jax.Array:
    """Deterministic sinusoidal buffer, identical to the PyTorch __init__.

    Note: assumes even d_model (same limitation as the PyTorch original).
    """
    position = jnp.arange(max_len, dtype=jnp.float32)[:, None]
    div_term = jnp.exp(
        jnp.arange(0, d_model, 2, dtype=jnp.float32)
        * (-math.log(10000.0) / d_model)
    )
    pe = jnp.zeros((max_len, 1, d_model), dtype=jnp.float32)
    pe = pe.at[:, 0, 0::2].set(jnp.sin(position * div_term))
    pe = pe.at[:, 0, 1::2].set(jnp.cos(position * div_term))
    return pe


if __name__ == "__main__":
    # Small shapes consistent with the forward pass.
    B, S, D = 2, 8, 32
    MAX_LEN = 64

    key = jax.random.PRNGKey(0)
    kx, kt = jax.random.split(key)
    x = jax.random.normal(kx, (B, S, D), dtype=jnp.float32)
    t = jax.random.randint(kt, (B,), 0, MAX_LEN, dtype=jnp.int32)

    pe = make_pe(D, MAX_LEN)

    # Reference (pure JAX, eval-mode dropout): x + pe[t] broadcast over seq.
    ref = x + pe[t]  # pe[t]: [B, 1, D] -> broadcast to [B, S, D]

    out = time_encoding(x, t, pe)
    out = jax.block_until_ready(out)

    assert out.shape == (B, S, D)
    assert jnp.allclose(out, ref, atol=1e-6), "mismatch vs reference"

    print("KERNEL_OK")
</pallas_src>

<mosaic_0001>
module attributes {stable_mosaic.version = 11 : i64} {
  func.func @_time_encoding_kernel(%arg0: i32, %arg1: i32, %arg2: memref<1x2x128xf32, #tpu.memory_space<vmem>>, %arg3: memref<1x1x128xf32, #tpu.memory_space<vmem>>, %arg4: memref<1x2x128xf32, #tpu.memory_space<vmem>>) attributes {dimension_semantics = [#tpu.dimension_semantics<parallel>, #tpu.dimension_semantics<parallel>], iteration_bounds = array<i64: 2, 1>, scalar_prefetch = 0 : i64, scratch_operands = 0 : i64, tpu.core_type = #tpu.core_type<tc>, window_params = [{transform_indices = @transform_0, window_bounds = array<i64: 1, 2, 128>}, {transform_indices = @transform_1, window_bounds = array<i64: 1, 1, 128>}, {transform_indices = @transform_2, window_bounds = array<i64: 1, 2, 128>}]} {
    %c0 = arith.constant 0 : index
    %c0_0 = arith.constant 0 : index
    %c0_1 = arith.constant 0 : index
    %0 = vector.load %arg2[%c0, %c0_0, %c0_1] : memref<1x2x128xf32, #tpu.memory_space<vmem>>, vector<1x2x128xf32>
    %1 = vector.shape_cast %0 : vector<1x2x128xf32> to vector<2x128xf32>
    %c0_2 = arith.constant 0 : index
    %c0_3 = arith.constant 0 : index
    %c0_4 = arith.constant 0 : index
    %2 = vector.load %arg3[%c0_2, %c0_3, %c0_4] : memref<1x1x128xf32, #tpu.memory_space<vmem>>, vector<1x1x128xf32>
    %3 = vector.shape_cast %2 : vector<1x1x128xf32> to vector<1x128xf32>
    %4 = vector.broadcast %3 : vector<1x128xf32> to vector<2x128xf32>
    %5 = arith.addf %1, %4 : vector<2x128xf32>
    %c0_5 = arith.constant 0 : index
    %c0_6 = arith.constant 0 : index
    %c0_7 = arith.constant 0 : index
    %6 = vector.load %arg4[%c0_5, %c0_6, %c0_7] : memref<1x2x128xf32, #tpu.memory_space<vmem>>, vector<1x2x128xf32>
    %7 = vector.shape_cast %6 : vector<1x2x128xf32> to vector<2x128xf32>
    %8 = vector.shape_cast %5 : vector<2x128xf32> to vector<1x2x128xf32>
    tpu.vector_store %arg4[%c0_5, %c0_6, %c0_7], %8 {strides = array<i32>} : memref<1x2x128xf32, #tpu.memory_space<vmem>>, vector<1x2x128xf32>,
    return
  }
  func.func @transform_0(%arg0: i32, %arg1: i32) -> (i32, i32, i32) {
    %c0_i32 = arith.constant 0 : i32
    %c0_i32_0 = arith.constant 0 : i32
    return %arg0, %arg1, %c0_i32 : i32, i32, i32
  }
  func.func @transform_1(%arg0: i32, %arg1: i32) -> (i32, i32, i32) {
    %c0_i32 = arith.constant 0 : i32
    %c0_i32_0 = arith.constant 0 : i32
    %c0_i32_1 = arith.constant 0 : i32
    return %arg0, %c0_i32, %c0_i32_0 : i32, i32, i32
  }
  func.func @transform_2(%arg0: i32, %arg1: i32) -> (i32, i32, i32) {
    %c0_i32 = arith.constant 0 : i32
    %c0_i32_0 = arith.constant 0 : i32
    return %arg0, %arg1, %c0_i32 : i32, i32, i32
  }
}

</mosaic_0001>

<llo_original>
// kernel: tpu_custom_call.1
$region0: #{tpu_custom_call.1}
  #allocation0 [shape = 'u32[]', space=smem, size = 0x4, offset = 0x4, fixed_abs, tag = 'smem constant byte address 0x4 - core index']
  #allocation1 [shape = 'u32[72,128]{1,0:T(1,128)}', space=vmem, size = 0x9000, scoped, tag = 'internal scratch']
  %s0 = inlined_call_operand.hbm [shape: f32[2,2,128], index: 0, kind: input, shape index: {}, may-alias: {0,2}]
  %s1 = inlined_call_operand.vmem [shape: f32[2,1,128], index: 1, kind: input, shape index: {}]
  %s2 = inlined_call_operand.hbm [shape: f32[2,2,128], index: 2, kind: output, shape index: {}, may-alias: {0,2}]
  %s3 = sld [smem:[#allocation0]]
  $region45: #{tpu_custom_call.1} parent=0
    _
  %s5 = ssub.s32 1, %s3
  %s6 = scalar_select 0, %s5, %s3
  $region1: #{tpu_custom_call.1} parent=0
    #allocation2 [shape = 'u8[2048]{0}', space=vmem, size = 0x800, scoped, tag = 'input window, operand 0']
    #allocation3 [shape = 's32[2]{0}', space=sflag, size = 0x8, scoped, tag = 'scoped memory for tpu_custom_call.1']
    #allocation4 [shape = 's32[2]{0}', space=sflag, size = 0x8, scoped, tag = 'scoped memory for tpu_custom_call.1']
    #allocation5 [shape = 'u8[2048]{0}', space=vmem, size = 0x800, scoped, tag = 'output window, operand 0']
    %7 = vsyncpa [#allocation3], 0
    %s8 = scalar_lea.sflag [#allocation3], 1
    %9 = vsyncpa %s8, 0
    %10 = vsyncpa [#allocation4], 0
    %s11 = scalar_lea.sflag [#allocation4], 1
    %12 = vsyncpa %s11, 0
    loop: start=0, step=1, limit=4
    $region2: #{tpu_custom_call.1} parent=1 // loop_pre_header
      _
    $region3: #{tpu_custom_call.1} parent=1 // loop_header
      %s14 = sphi 0, %s18
      %p15 = scmp.ge.s32.totalorder %s14, 4
      %s21 = sphi 0, %s33
      %s22 = sphi 0, %s29
      %s23 = sphi 0, %s21
      %s24 = sphi 0, %s22
      %s25 = sphi 0, %s23
      %s26 = sphi 0, %s24
      %s38 = sphi 0, %s40
      %s41 = sphi 0, %s38
      %s42 = sphi 0, %s41
      %s58 = sphi 0, %s42
      %s64 = sphi 0, %s66
      %s67 = sphi 0, %s64
      %s68 = sphi 0, %s67
      %s84 = sphi 0, %s68
      %s92 = sphi 0, %s94
      %s95 = sphi 0, %s92
      %s96 = sphi 0, %s95
      %s112 = sphi 0, %s96
    $region4: #{tpu_custom_call.1} parent=1 // loop_header_branch
      %17 = sbr.rel (%p15) target = $region8
    $region5: #{tpu_custom_call.1} parent=1 // loop_body
      %s19 = ssub.s32 %s14, 1
      %s20 = ssub.s32 %s14, 2
      %s27 = sadd.s32 1, %s22
      %p28 = scmp.ge.s32.totalorder %s27, 1
      %s29 = scalar_select %p28, 0, %s27
      %s30 = sadd.s32 1, %s21
      %s31 = scalar_select %p28, %s30, %s21
      %p32 = scmp.ge.s32.totalorder %s31, 2
      %s33 = scalar_select %p32, 0, %s31
      %s34 = ssub.s32 %s21, %s33
      %s35 = ssub.s32 %s22, %s29
      %s36 = sor.u32 %s34, %s35
      %p37 = scmp.eq.s32.totalorder %s36, 0
      %s39 = sadd.s32 %s38, 1
      %s40 = scalar_select %p37, %s38, %s39
      %p43 = pneg %p37
      %p44 = scmp.eq.s32.totalorder %s14, 1
      %p45 = por %p43, %p44
      %p46 = scmp.ne.s32.totalorder %s38, %s41
      %p47 = scmp.eq.s32.totalorder %s14, 0
      %p48 = por %p46, %p47
      %p49 = scmp.ne.s32.totalorder %s38, %s41
      %p50 = scmp.eq.s32.totalorder %s19, 1
      %p51 = por %p49, %p50
      %p52 = scmp.ne.s32.totalorder %s41, %s42
      %p53 = scmp.eq.s32.totalorder %s19, 0
      %p54 = por %p52, %p53
      %p55 = scmp.ne.s32.totalorder %s41, %s42
      %p56 = scmp.eq.s32.totalorder %s20, 1
      %p57 = por %p55, %p56
      %p59 = scmp.ne.s32.totalorder %s42, %s58
      %p60 = scmp.eq.s32.totalorder %s20, 0
      %p61 = por %p59, %p60
      %s62 = ssub.s32 %s21, %s33
      %p63 = scmp.eq.s32.totalorder %s62, 0
      %s65 = sadd.s32 %s64, 1
      %s66 = scalar_select %p63, %s64, %s65
      %p69 = pneg %p63
      %p70 = scmp.eq.s32.totalorder %s14, 1
      %p71 = por %p69, %p70
      %p72 = scmp.ne.s32.totalorder %s64, %s67
      %p73 = scmp.eq.s32.totalorder %s14, 0
      %p74 = por %p72, %p73
      %p75 = scmp.ne.s32.totalorder %s64, %s67
      %p76 = scmp.eq.s32.totalorder %s19, 1
      %p77 = por %p75, %p76
      %p78 = scmp.ne.s32.totalorder %s67, %s68
      %p79 = scmp.eq.s32.totalorder %s19, 0
      %p80 = por %p78, %p79
      %p81 = scmp.ne.s32.totalorder %s67, %s68
      %p82 = scmp.eq.s32.totalorder %s20, 1
      %p83 = por %p81, %p82
      %p85 = scmp.ne.s32.totalorder %s68, %s84
      %p86 = scmp.eq.s32.totalorder %s20, 0
      %p87 = por %p85, %p86
      %s88 = ssub.s32 %s21, %s33
      %s89 = ssub.s32 %s22, %s29
      %s90 = sor.u32 %s88, %s89
      %p91 = scmp.eq.s32.totalorder %s90, 0
      %s93 = sadd.s32 %s92, 1
      %s94 = scalar_select %p91, %s92, %s93
      %p97 = pneg %p91
      %p98 = scmp.eq.s32.totalorder %s14, 1
      %p99 = por %p97, %p98
      %p100 = scmp.ne.s32.totalorder %s92, %s95
      %p101 = scmp.eq.s32.totalorder %s14, 0
      %p102 = por %p100, %p101
      %p103 = scmp.ne.s32.totalorder %s92, %s95
      %p104 = scmp.eq.s32.totalorder %s19, 1
      %p105 = por %p103, %p104
      %p106 = scmp.ne.s32.totalorder %s95, %s96
      %p107 = scmp.eq.s32.totalorder %s19, 0
      %p108 = por %p106, %p107
      %p109 = scmp.ne.s32.totalorder %s95, %s96
      %p110 = scmp.eq.s32.totalorder %s20, 1
      %p111 = por %p109, %p110
      %p113 = scmp.ne.s32.totalorder %s96, %s112
      %p114 = scmp.eq.s32.totalorder %s20, 0
      %p115 = por %p113, %p114
      %p116 = scmp.le.s32.totalorder 1, %s14
      %p117 = scmp.lt.s32.totalorder %s14, 3
      %p118 = pnand %p116, %p117
      %p119 = pneg %p118
      // Predicated region
      $region9: #{tpu_custom_call.1} parent=5 // pred_check
        _
      $region10: #{tpu_custom_call.1} parent=5 // pred_check_branch
        %121 = sbr.rel (%p118) target = $region12
      $region11: #{tpu_custom_call.1} parent=5 // pred_region
        %s122 = ssub.s32 %s14, 1
      $region12: #{tpu_custom_call.1} parent=5 // pred_fallthru
        _
      %p123 = scmp.lt.s32.totalorder %s14, 2
      // Predicated region
      $region13: #{tpu_custom_call.1} parent=5 // pred_check
        %p124 = pneg %p123
      $region14: #{tpu_custom_call.1} parent=5 // pred_check_branch
        %126 = sbr.rel (%p124) target = $region16
      $region15: #{tpu_custom_call.1} parent=5 // pred_region
        // Predicated region
        $region17: #{tpu_custom_call.1} parent=15 // pred_check
          %p127 = pneg %p48
        $region18: #{tpu_custom_call.1} parent=15 // pred_check_branch
          %129 = sbr.rel (%p127) target = $region20
        $region19: #{tpu_custom_call.1} parent=15 // pred_region
          %s130 = sand.u32 %s38, 1
          %s131 = scalar_lea.sflag [#allocation3], %s130
          %s132 = sand.u32 %s38, 1
          %s133 = smul.addr %s132, 2
          %s134 = scalar_lea.vmem [#allocation2], %s133
          %136 = vsyncadd %s131, 0
          %s137 = sadd.s32 %s22, %s21
          %s138 = smul.addr %s137, 2
          %s139 = scalar_lea.hbm %s0, %s138
          %s141 = sshll.u32 %s139, 4
          %s142 = int_to_ptr.hbm [resolvable:$true] %s141
          %s143 = sshll.u32 %s134, 4
          %s144 = int_to_ptr.vmem [resolvable:$true] %s143
          %146 = dma.hbm_to_vmem [thread:$0]  %s142, 32, %s144, %s131
        $region20: #{tpu_custom_call.1} parent=15 // pred_fallthru
          _
        // Predicated region
        $region21: #{tpu_custom_call.1} parent=15 // pred_check
          %p147 = pneg %p74
        $region22: #{tpu_custom_call.1} parent=15 // pred_check_branch
          %149 = sbr.rel (%p147) target = $region24
        $region23: #{tpu_custom_call.1} parent=15 // pred_region
          %p150 = scmp.lt.s32.totalorder %s21, 1
          %s151 = scalar_select %p150, %s21, 1
          %s152 = scalar_lea.vmem %s1, %s151
        $region24: #{tpu_custom_call.1} parent=15 // pred_fallthru
          _
      $region16: #{tpu_custom_call.1} parent=5 // pred_fallthru
        _
      %p153 = scmp.le.s32.totalorder 1, %s14
      %p154 = scmp.lt.s32.totalorder %s14, 3
      %p155 = pnand %p153, %p154
      %p156 = pneg %p155
      // Predicated region
      $region25: #{tpu_custom_call.1} parent=5 // pred_check
        _
      $region26: #{tpu_custom_call.1} parent=5 // pred_check_branch
        %158 = sbr.rel (%p155) target = $region28
      $region27: #{tpu_custom_call.1} parent=5 // pred_region
        %s159 = ssub.s32 %s14, 1
        %s160 = sand.u32 %s41, 1
        %s161 = scalar_lea.sflag [#allocation3], %s160
        %s162 = sand.u32 %s41, 1
        %s163 = smul.addr %s162, 2
        %s164 = scalar_lea.vmem [#allocation2], %s163
        // Predicated region
        $region29: #{tpu_custom_call.1} parent=27 // pred_check
          %p165 = pneg %p54
        $region30: #{tpu_custom_call.1} parent=27 // pred_check_branch
          %167 = sbr.rel (%p165) target = $region32
        $region31: #{tpu_custom_call.1} parent=27 // pred_region
          %169 = dma.done %s161, 32
        $region32: #{tpu_custom_call.1} parent=27 // pred_fallthru
          _
        %s170 = sand.u32 %s41, 1
        %s171 = scalar_lea.sflag [#allocation3], %s170
        %s172 = sand.u32 %s41, 1
        %s173 = smul.addr %s172, 2
        %s174 = scalar_lea.vmem [#allocation2], %s173
        %p175 = pneg %p54
        %p176 = pneg %p51
        %p177 = scmp.lt.s32.totalorder %s23, 1
        %s178 = scalar_select %p177, %s23, 1
        %s179 = scalar_lea.vmem %s1, %s178
        %p180 = pneg %p80
        %p181 = pneg %p77
        %p182 = pneg %p108
        %p183 = pneg %p105
        %s184 = sand.u32 %s95, 1
        %s185 = scalar_lea.sflag [#allocation4], %s184
        %s186 = sand.u32 %s95, 1
        %s187 = smul.addr %s186, 2
        %s188 = scalar_lea.vmem [#allocation5], %s187
        %p189 = scmp.lt.s32.totalorder %s23, 1
        %s190 = scalar_select %p189, %s23, 1
        %s191 = scalar_lea.vmem %s1, %s190
        %v192 = vld [vmem:[%s164] sm:$0x3]
        %v193 = vld [vmem:[%s191] sm:$0x1]
        %v195 = vperm.slane %v193, 0
        %v197 = vadd.f32 %v192, %v195
        %198 = vst [vmem:[%s188] sm:$0x3] %v197
        %s199 = sand.u32 %s95, 1
        %s200 = scalar_lea.sflag [#allocation4], %s199
        %s201 = sand.u32 %s95, 1
        %s202 = smul.addr %s201, 2
        %s203 = scalar_lea.vmem [#allocation5], %s202
        // Predicated region
        $region33: #{tpu_custom_call.1} parent=27 // pred_check
          %p204 = pneg %p105
        $region34: #{tpu_custom_call.1} parent=27 // pred_check_branch
          %206 = sbr.rel (%p204) target = $region36
        $region35: #{tpu_custom_call.1} parent=27 // pred_region
          %208 = vsyncadd %s200, 0
          %s209 = sadd.s32 %s24, %s23
          %s210 = smul.addr %s209, 2
          %s211 = scalar_lea.hbm %s2, %s210
          %s213 = sshll.u32 %s203, 4
          %s214 = int_to_ptr.vmem [resolvable:$true] %s213
          %s215 = sshll.u32 %s211, 4
          %s216 = int_to_ptr.hbm [resolvable:$true] %s215
          %218 = dma.vmem_to_hbm [thread:$0]  %s214, 32, %s216, %s200
        $region36: #{tpu_custom_call.1} parent=27 // pred_fallthru
          _
      $region28: #{tpu_custom_call.1} parent=5 // pred_fallthru
        _
      %p219 = scmp.le.s32.totalorder 2, %s14
      // Predicated region
      $region37: #{tpu_custom_call.1} parent=5 // pred_check
        %p220 = pneg %p219
      $region38: #{tpu_custom_call.1} parent=5 // pred_check_branch
        %222 = sbr.rel (%p220) target = $region40
      $region39: #{tpu_custom_call.1} parent=5 // pred_region
        %s223 = ssub.s32 %s14, 2
        // Predicated region
        $region41: #{tpu_custom_call.1} parent=39 // pred_check
          %p224 = pneg %p111
        $region42: #{tpu_custom_call.1} parent=39 // pred_check_branch
          %226 = sbr.rel (%p224) target = $region44
        $region43: #{tpu_custom_call.1} parent=39 // pred_region
          %s227 = sand.u32 %s96, 1
          %s228 = scalar_lea.sflag [#allocation4], %s227
          %s229 = sand.u32 %s96, 1
          %s230 = smul.addr %s229, 2
          %s231 = scalar_lea.vmem [#allocation5], %s230
          %233 = dma.done %s228, 32
        $region44: #{tpu_custom_call.1} parent=39 // pred_fallthru
          _
      $region40: #{tpu_custom_call.1} parent=5 // pred_fallthru
        _
    $region6: #{tpu_custom_call.1} parent=1 // loop_footer
      %s18 = sadd.s32 1, %s14
    $region7: #{tpu_custom_call.1} parent=1 // loop_footer_branch
      %13 = sbr.rel target = $region3
    $region8: #{tpu_custom_call.1} parent=1 // loop_exit
      _
    %234 = vsyncpa [#allocation3], 1
    %s235 = scalar_lea.sflag [#allocation3], 1
    %236 = vsyncpa %s235, 1
    %237 = vsyncpa [#allocation4], 1
    %s238 = scalar_lea.sflag [#allocation4], 1
    %239 = vsyncpa %s238, 1

</llo_original>
